<compile_context>
chip_gen: v5e
topology: v5e:2x2
jax: 0.10.0
libtpu: 0.0.40
codegen_flags: <defaults>
</compile_context>

<pallas_src>
import math
import jax
import jax.numpy as jnp
from jax.experimental import pallas as pl
from jax.experimental.pallas import tpu as pltpu  # noqa: F401  (TPU backend)

# ---- config (consistent with the module's __init__) ----
S, B = 8, 2            # seq length, batch
E = 32                 # d_model
H = 4                  # n_heads
DH = E // H            # head dim
DFF = 64               # d_ff
EPS = 1e-5             # nn.LayerNorm default eps
NEG = -1e30            # additive mask for cross-batch attention entries
LANES = 128            # slab lane width (one vreg row)

# Bias-slab row indices (one vector per sublane of an (8,128) f32 tile).
R_BQKV, R_BO, R_G1, R_BE1, R_BF1, R_BF2, R_G2, R_BE2 = range(8)
# Weight-slab sublane offsets (all matrices stored at lane offset 0).
W_QKV, W_O, W_F1, W_F2 = 0, E, 2 * E, 3 * E
W_ROWS = 3 * E + DFF   # 160


def _layernorm(x, gamma, beta):
    mu = jnp.mean(x, axis=-1, keepdims=True)
    var = jnp.mean((x - mu) ** 2, axis=-1, keepdims=True)
    return (x - mu) * jax.lax.rsqrt(var + EPS) * gamma + beta


def encoder_layer_kernel(x_ref, b_ref, w_ref, o_ref):
    # x_ref: (S*B, E) f32 — rows are (s, b) tokens, s-major / b-minor.
    # b_ref: (8, 128)  f32 packed bias / LayerNorm vectors.
    # w_ref: (160, 128) bf16 packed weight matrices.
    x = x_ref[...]                                                       # (16, 32) f32
    xb = x.astype(jnp.bfloat16)

    # ---- unpack packed parameter slabs (static, aligned slices) ----
    bqkv = b_ref[R_BQKV:R_BQKV + 1, 0:3 * E]                             # (1, 96)
    bo   = b_ref[R_BO:R_BO + 1, 0:E]
    g1   = b_ref[R_G1:R_G1 + 1, 0:E]
    be1  = b_ref[R_BE1:R_BE1 + 1, 0:E]
    bf1  = b_ref[R_BF1:R_BF1 + 1, 0:DFF]
    bf2  = b_ref[R_BF2:R_BF2 + 1, 0:E]
    g2   = b_ref[R_G2:R_G2 + 1, 0:E]
    be2  = b_ref[R_BE2:R_BE2 + 1, 0:E]

    wqkv = w_ref[W_QKV:W_QKV + E, 0:3 * E]                               # (32, 96) bf16
    wo   = w_ref[W_O:W_O + E, 0:E]                                       # (32, 32) bf16
    wf1  = w_ref[W_F1:W_F1 + E, 0:DFF]                                   # (32, 64) bf16
    wf2  = w_ref[W_F2:W_F2 + DFF, 0:E]                                   # (64, 32) bf16

    # ---- fused QKV projection (bf16 operands, f32 accumulation) ----
    qkv = jnp.dot(xb, wqkv, preferred_element_type=jnp.float32) + bqkv   # (16, 96) f32
    scale = 1.0 / math.sqrt(DH)
    q = qkv[:, 0:E] * scale               # scale hoisted: applied once, before the head loop
    k = qkv[:, E:2 * E]
    v = qkv[:, 2 * E:3 * E]
    kb = k.astype(jnp.bfloat16)
    vb = v.astype(jnp.bfloat16)

    # ---- batch-separation bias, generated in-kernel (no HBM operand / DMA) ----
    # Row r of the folded (S*B) axis belongs to batch r % B; B == 2 (power of two) -> use &.
    rows = jax.lax.broadcasted_iota(jnp.int32, (S * B, S * B), 0)
    cols = jax.lax.broadcasted_iota(jnp.int32, (S * B, S * B), 1)
    bias = jnp.where((rows & (B - 1)) == (cols & (B - 1)), 0.0, NEG)     # (16, 16) f32

    # ---- multi-head self-attention via constant lane masks (no sub-vreg head slicing) ----
    lane = jax.lax.broadcasted_iota(jnp.int32, (1, E), 1)                # (1, 32)
    ctx = jnp.zeros((S * B, E), jnp.float32)
    for h in range(H):
        m = ((lane >= h * DH) & (lane < (h + 1) * DH)).astype(jnp.float32)   # (1, 32)
        qh = (q * m).astype(jnp.bfloat16)      # zero non-head lanes; zero-padded K is free on MXU
        # q.k contracted on the last axis of BOTH operands: no k^T materialized.
        s = jax.lax.dot_general(qh, kb, (((1,), (1,)), ((), ())),
                                preferred_element_type=jnp.float32)      # (16, 16) f32
        s = s + bias
        s = s - jnp.max(s, axis=-1, keepdims=True)
        p = jnp.exp(s)                                                   # f32 (v5e-safe)
        p = p * pl.reciprocal(jnp.sum(p, axis=-1, keepdims=True), approx=True)
        ch = jnp.dot(p.astype(jnp.bfloat16), vb,
                     preferred_element_type=jnp.float32)                 # (16, 32) f32
        ctx = ctx + ch * m                     # head-h lanes only -> ctx lands concatenated

    # ---- single output projection + residual + LayerNorm 1 ----
    attn = jnp.dot(ctx.astype(jnp.bfloat16), wo,
                   preferred_element_type=jnp.float32) + bo              # (16, 32) f32
    x1 = _layernorm(x + attn, g1, be1)

    # ---- feed-forward: Linear -> ReLU -> Linear (dropout = identity, eval mode) ----
    hdn = jnp.dot(x1.astype(jnp.bfloat16), wf1,
                  preferred_element_type=jnp.float32) + bf1              # (16, 64) f32
    hdn = jnp.maximum(hdn, 0.0)
    ff = jnp.dot(hdn.astype(jnp.bfloat16), wf2,
                 preferred_element_type=jnp.float32) + bf2               # (16, 32) f32

    # ---- residual + LayerNorm 2 ----
    x2 = _layernorm(x1 + ff, g2, be2)
    o_ref[...] = x2.astype(o_ref.dtype)


def transformer_encoder_layer(x_sbe, params):
    """x_sbe: (S, B, E). Returns (S, B, E). Single kernel invocation, no grid."""
    # Row-major dim-merge: metadata-only reshape, no HBM relayout (unlike a transpose).
    x2d = x_sbe.reshape(S * B, E)
    # No grid / no BlockSpecs: every operand is a full-array VMEM block (block dims equal the
    # array dims, so the (8,128) rule is satisfied); total VMEM footprint << 100 KB on
    # v5e/v6e/v7x.  Only 3 input DMAs: x, the (8,128) bias slab, the (160,128) bf16 weight slab.
    out2d = pl.pallas_call(
        encoder_layer_kernel,
        out_shape=jax.ShapeDtypeStruct((S * B, E), x_sbe.dtype),
    )(x2d, params["bias_slab"], params["w_slab"])
    return out2d.reshape(S, B, E)


def init_params(key):
    ks = jax.random.split(key, 6)
    std = 0.02
    # f32 "master" parameters (also used by the pure-JAX reference).
    p = {
        # in_proj: PyTorch stores (3E, E); pre-transposed to (E, 3E) so kernel does x @ W
        "wqkv": jax.random.normal(ks[0], (E, 3 * E), jnp.float32) * std,
        "bqkv": jnp.zeros((3 * E,), jnp.float32),
        "wo":   jax.random.normal(ks[1], (E, E), jnp.float32) * std,
        "bo":   jnp.zeros((E,), jnp.float32),
        "g1":   jnp.ones((E,), jnp.float32),
        "be1":  jnp.zeros((E,), jnp.float32),
        "wf1":  jax.random.normal(ks[2], (E, DFF), jnp.float32) * std,
        "bf1":  jax.random.normal(ks[3], (DFF,), jnp.float32) * std,
        "wf2":  jax.random.normal(ks[4], (DFF, E), jnp.float32) * std,
        "bf2":  jax.random.normal(ks[5], (E,), jnp.float32) * std,
        "g2":   jnp.ones((E,), jnp.float32),
        "be2":  jnp.zeros((E,), jnp.float32),
    }

    # ---- packed kernel operands ----
    def row(v):                       # pad a (<=128,) vector to one 128-lane row
        return jnp.pad(v, (0, LANES - v.shape[0]))

    p["bias_slab"] = jnp.stack(
        [row(p["bqkv"]), row(p["bo"]), row(p["g1"]), row(p["be1"]),
         row(p["bf1"]), row(p["bf2"]), row(p["g2"]), row(p["be2"])],
        axis=0)                                                          # (8, 128) f32

    def mat(w):                       # pad a (rows, <=128) matrix to 128 lanes
        return jnp.pad(w, ((0, 0), (0, LANES - w.shape[1])))

    p["w_slab"] = jnp.concatenate(
        [mat(p["wqkv"]), mat(p["wo"]), mat(p["wf1"]), mat(p["wf2"])],
        axis=0).astype(jnp.bfloat16)                                     # (160, 128) bf16
    assert p["w_slab"].shape == (W_ROWS, LANES)
    return p


def reference(x_sbe, p):
    """Pure-JAX f32 reference mirroring the PyTorch forward (eval mode)."""
    def per_batch(x):  # x: (S, E)
        qkv = x @ p["wqkv"] + p["bqkv"]
        q, k, v = qkv[:, :E], qkv[:, E:2 * E], qkv[:, 2 * E:]
        qh = q.reshape(S, H, DH).transpose(1, 0, 2) / math.sqrt(DH)
        kh = k.reshape(S, H, DH).transpose(1, 0, 2)
        vh = v.reshape(S, H, DH).transpose(1, 0, 2)
        s = jnp.einsum("hqd,hkd->hqk", qh, kh)
        pmat = jax.nn.softmax(s, axis=-1)
        o = jnp.einsum("hqk,hkd->hqd", pmat, vh).transpose(1, 0, 2).reshape(S, E)
        attn = o @ p["wo"] + p["bo"]
        x1 = _layernorm(x + attn, p["g1"], p["be1"])
        hdn = jnp.maximum(x1 @ p["wf1"] + p["bf1"], 0.0)
        ff = hdn @ p["wf2"] + p["bf2"]
        return _layernorm(x1 + ff, p["g2"], p["be2"])
    return jnp.stack([per_batch(x_sbe[:, b]) for b in range(B)], axis=1)


if __name__ == "__main__":
    key = jax.random.PRNGKey(0)
    k_x, k_p = jax.random.split(key)
    x = jax.random.normal(k_x, (S, B, E), jnp.float32)   # (seq, batch, d_model)
    params = init_params(k_p)

    out = transformer_encoder_layer(x, params)
    out = jax.block_until_ready(out)

    ref = reference(x, params)
    assert out.shape == (S, B, E)
    # bf16 MXU operands (weights stored bf16) + approx-reciprocal softmax denominator
    # => slightly loosened tolerance vs the pure-f32 reference.
    assert jnp.allclose(out, ref, atol=5e-3, rtol=5e-3), "mismatch vs pure-JAX reference"
    print("KERNEL_OK")
</pallas_src>

<mosaic_0001>
module attributes {stable_mosaic.version = 11 : i64} {
  func.func @encoder_layer_kernel(%arg0: memref<16x32xf32, #tpu.memory_space<vmem>>, %arg1: memref<8x128xf32, #tpu.memory_space<vmem>>, %arg2: memref<160x128xbf16, #tpu.memory_space<vmem>>, %arg3: memref<16x32xf32, #tpu.memory_space<vmem>>) attributes {dimension_semantics = [], scalar_prefetch = 0 : i64, scratch_operands = 0 : i64, tpu.core_type = #tpu.core_type<tc>} {
    %c0 = arith.constant 0 : index
    %c0_0 = arith.constant 0 : index
    %0 = vector.load %arg0[%c0, %c0_0] : memref<16x32xf32, #tpu.memory_space<vmem>>, vector<16x32xf32>
    %1 = arith.truncf %0 : vector<16x32xf32> to vector<16x32xbf16>
    %c0_1 = arith.constant 0 : index
    %c0_2 = arith.constant 0 : index
    %2 = vector.load %arg1[%c0_1, %c0_2] : memref<8x128xf32, #tpu.memory_space<vmem>>, vector<1x96xf32>
    %c1 = arith.constant 1 : index
    %c0_3 = arith.constant 0 : index
    %3 = vector.load %arg1[%c1, %c0_3] : memref<8x128xf32, #tpu.memory_space<vmem>>, vector<1x32xf32>
    %c2 = arith.constant 2 : index
    %c0_4 = arith.constant 0 : index
    %4 = vector.load %arg1[%c2, %c0_4] : memref<8x128xf32, #tpu.memory_space<vmem>>, vector<1x32xf32>
    %c3 = arith.constant 3 : index
    %c0_5 = arith.constant 0 : index
    %5 = vector.load %arg1[%c3, %c0_5] : memref<8x128xf32, #tpu.memory_space<vmem>>, vector<1x32xf32>
    %c4 = arith.constant 4 : index
    %c0_6 = arith.constant 0 : index
    %6 = vector.load %arg1[%c4, %c0_6] : memref<8x128xf32, #tpu.memory_space<vmem>>, vector<1x64xf32>
    %c5 = arith.constant 5 : index
    %c0_7 = arith.constant 0 : index
    %7 = vector.load %arg1[%c5, %c0_7] : memref<8x128xf32, #tpu.memory_space<vmem>>, vector<1x32xf32>
    %c6 = arith.constant 6 : index
    %c0_8 = arith.constant 0 : index
    %8 = vector.load %arg1[%c6, %c0_8] : memref<8x128xf32, #tpu.memory_space<vmem>>, vector<1x32xf32>
    %c7 = arith.constant 7 : index
    %c0_9 = arith.constant 0 : index
    %9 = vector.load %arg1[%c7, %c0_9] : memref<8x128xf32, #tpu.memory_space<vmem>>, vector<1x32xf32>
    %c0_10 = arith.constant 0 : index
    %c0_11 = arith.constant 0 : index
    %10 = vector.load %arg2[%c0_10, %c0_11] : memref<160x128xbf16, #tpu.memory_space<vmem>>, vector<32x96xbf16>
    %c32 = arith.constant 32 : index
    %c0_12 = arith.constant 0 : index
    %11 = vector.load %arg2[%c32, %c0_12] : memref<160x128xbf16, #tpu.memory_space<vmem>>, vector<32x32xbf16>
    %c64 = arith.constant 64 : index
    %c0_13 = arith.constant 0 : index
    %12 = vector.load %arg2[%c64, %c0_13] : memref<160x128xbf16, #tpu.memory_space<vmem>>, vector<32x64xbf16>
    %c96 = arith.constant 96 : index
    %c0_14 = arith.constant 0 : index
    %13 = vector.load %arg2[%c96, %c0_14] : memref<160x128xbf16, #tpu.memory_space<vmem>>, vector<64x32xbf16>
    %cst = arith.constant dense<0.000000e+00> : vector<16x96xf32>
    %14 = tpu.matmul %1, %10, %cst {dimension_numbers = #tpu.dot_dimension_numbers<[1], [0], [0], [1], [0, 0, 1, 1], [], []>} : vector<16x32xbf16>, vector<32x96xbf16>, vector<16x96xf32> -> vector<16x96xf32>
    %15 = vector.broadcast %2 : vector<1x96xf32> to vector<16x96xf32>
    %16 = arith.addf %14, %15 : vector<16x96xf32>
    %17 = vector.extract_strided_slice %16 {offsets = [0, 0], sizes = [16, 32], strides = [1, 1]} : vector<16x96xf32> to vector<16x32xf32>
    %cst_15 = arith.constant 0.353553385 : f32
    %18 = vector.broadcast %cst_15 : f32 to vector<16x32xf32>
    %19 = arith.mulf %17, %18 : vector<16x32xf32>
    %20 = vector.extract_strided_slice %16 {offsets = [0, 32], sizes = [16, 32], strides = [1, 1]} : vector<16x96xf32> to vector<16x32xf32>
    %21 = vector.extract_strided_slice %16 {offsets = [0, 64], sizes = [16, 32], strides = [1, 1]} : vector<16x96xf32> to vector<16x32xf32>
    %22 = arith.truncf %20 : vector<16x32xf32> to vector<16x32xbf16>
    %23 = arith.truncf %21 : vector<16x32xf32> to vector<16x32xbf16>
    %24 = tpu.iota {dimensions = array<i32: 0>} : vector<16x16xi32>
    %25 = tpu.iota {dimensions = array<i32: 1>} : vector<16x16xi32>
    %c1_i32 = arith.constant 1 : i32
    %26 = vector.broadcast %c1_i32 : i32 to vector<16x16xi32>
    %27 = arith.andi %24, %26 : vector<16x16xi32>
    %c1_i32_16 = arith.constant 1 : i32
    %28 = vector.broadcast %c1_i32_16 : i32 to vector<16x16xi32>
    %29 = arith.andi %25, %28 : vector<16x16xi32>
    %30 = arith.cmpi eq, %27, %29 : vector<16x16xi32>
    %cst_17 = arith.constant 0.000000e+00 : f32
    %cst_18 = arith.constant -1.000000e+30 : f32
    %31 = vector.broadcast %cst_17 : f32 to vector<16x16xf32>
    %32 = vector.broadcast %cst_18 : f32 to vector<16x16xf32>
    %33 = arith.select %30, %31, %32 : vector<16x16xi1>, vector<16x16xf32>
    %34 = tpu.iota {dimensions = array<i32: 1>} : vector<1x32xi32>
    %cst_19 = arith.constant 0.000000e+00 : f32
    %35 = vector.broadcast %cst_19 : f32 to vector<16x32xf32>
    %c0_i32 = arith.constant 0 : i32
    %36 = vector.broadcast %c0_i32 : i32 to vector<1x32xi32>
    %37 = arith.cmpi sge, %34, %36 : vector<1x32xi32>
    %c8_i32 = arith.constant 8 : i32
    %38 = vector.broadcast %c8_i32 : i32 to vector<1x32xi32>
    %39 = arith.cmpi slt, %34, %38 : vector<1x32xi32>
    %40 = arith.andi %37, %39 : vector<1x32xi1>
    %41 = arith.extui %40 : vector<1x32xi1> to vector<1x32xi32>
    %42 = arith.sitofp %41 : vector<1x32xi32> to vector<1x32xf32>
    %43 = vector.broadcast %42 : vector<1x32xf32> to vector<16x32xf32>
    %44 = arith.mulf %19, %43 : vector<16x32xf32>
    %45 = arith.truncf %44 : vector<16x32xf32> to vector<16x32xbf16>
    %cst_20 = arith.constant dense<0.000000e+00> : vector<16x16xf32>
    %46 = tpu.matmul %45, %22, %cst_20 {dimension_numbers = #tpu.dot_dimension_numbers<[1], [1], [0], [0], [0, 0, 1, 0], [], []>} : vector<16x32xbf16>, vector<16x32xbf16>, vector<16x16xf32> -> vector<16x16xf32>
    %47 = arith.addf %46, %33 : vector<16x16xf32>
    %cst_21 = arith.constant dense<0xFF800000> : vector<16xf32>
    %48 = vector.multi_reduction <maximumf>, %47, %cst_21 [1] : vector<16x16xf32> to vector<16xf32>
    %49 = vector.shape_cast %48 : vector<16xf32> to vector<16x1xf32>
    %50 = vector.broadcast %49 : vector<16x1xf32> to vector<16x16xf32>
    %51 = arith.subf %47, %50 : vector<16x16xf32>
    %52 = math.exp %51 : vector<16x16xf32>
    %cst_22 = arith.constant dense<0.000000e+00> : vector<16xf32>
    %53 = vector.multi_reduction <add>, %52, %cst_22 [1] : vector<16x16xf32> to vector<16xf32>
    %54 = vector.shape_cast %53 : vector<16xf32> to vector<16x1xf32>
    %55 = tpu.reciprocal %54 {approx = true} : vector<16x1xf32> -> vector<16x1xf32>
    %56 = vector.broadcast %55 : vector<16x1xf32> to vector<16x16xf32>
    %57 = arith.mulf %52, %56 : vector<16x16xf32>
    %58 = arith.truncf %57 : vector<16x16xf32> to vector<16x16xbf16>
    %cst_23 = arith.constant dense<0.000000e+00> : vector<16x32xf32>
    %59 = tpu.matmul %58, %23, %cst_23 {dimension_numbers = #tpu.dot_dimension_numbers<[1], [0], [0], [1], [0, 0, 1, 1], [], []>} : vector<16x16xbf16>, vector<16x32xbf16>, vector<16x32xf32> -> vector<16x32xf32>
    %60 = vector.broadcast %42 : vector<1x32xf32> to vector<16x32xf32>
    %61 = arith.mulf %59, %60 : vector<16x32xf32>
    %62 = arith.addf %35, %61 : vector<16x32xf32>
    %c8_i32_24 = arith.constant 8 : i32
    %63 = vector.broadcast %c8_i32_24 : i32 to vector<1x32xi32>
    %64 = arith.cmpi sge, %34, %63 : vector<1x32xi32>
    %c16_i32 = arith.constant 16 : i32
    %65 = vector.broadcast %c16_i32 : i32 to vector<1x32xi32>
    %66 = arith.cmpi slt, %34, %65 : vector<1x32xi32>
    %67 = arith.andi %64, %66 : vector<1x32xi1>
    %68 = arith.extui %67 : vector<1x32xi1> to vector<1x32xi32>
    %69 = arith.sitofp %68 : vector<1x32xi32> to vector<1x32xf32>
    %70 = vector.broadcast %69 : vector<1x32xf32> to vector<16x32xf32>
    %71 = arith.mulf %19, %70 : vector<16x32xf32>
    %72 = arith.truncf %71 : vector<16x32xf32> to vector<16x32xbf16>
    %cst_25 = arith.constant dense<0.000000e+00> : vector<16x16xf32>
    %73 = tpu.matmul %72, %22, %cst_25 {dimension_numbers = #tpu.dot_dimension_numbers<[1], [1], [0], [0], [0, 0, 1, 0], [], []>} : vector<16x32xbf16>, vector<16x32xbf16>, vector<16x16xf32> -> vector<16x16xf32>
    %74 = arith.addf %73, %33 : vector<16x16xf32>
    %cst_26 = arith.constant dense<0xFF800000> : vector<16xf32>
    %75 = vector.multi_reduction <maximumf>, %74, %cst_26 [1] : vector<16x16xf32> to vector<16xf32>
    %76 = vector.shape_cast %75 : vector<16xf32> to vector<16x1xf32>
    %77 = vector.broadcast %76 : vector<16x1xf32> to vector<16x16xf32>
    %78 = arith.subf %74, %77 : vector<16x16xf32>
    %79 = math.exp %78 : vector<16x16xf32>
    %cst_27 = arith.constant dense<0.000000e+00> : vector<16xf32>
    %80 = vector.multi_reduction <add>, %79, %cst_27 [1] : vector<16x16xf32> to vector<16xf32>
    %81 = vector.shape_cast %80 : vector<16xf32> to vector<16x1xf32>
    %82 = tpu.reciprocal %81 {approx = true} : vector<16x1xf32> -> vector<16x1xf32>
    %83 = vector.broadcast %82 : vector<16x1xf32> to vector<16x16xf32>
    %84 = arith.mulf %79, %83 : vector<16x16xf32>
    %85 = arith.truncf %84 : vector<16x16xf32> to vector<16x16xbf16>
    %cst_28 = arith.constant dense<0.000000e+00> : vector<16x32xf32>
    %86 = tpu.matmul %85, %23, %cst_28 {dimension_numbers = #tpu.dot_dimension_numbers<[1], [0], [0], [1], [0, 0, 1, 1], [], []>} : vector<16x16xbf16>, vector<16x32xbf16>, vector<16x32xf32> -> vector<16x32xf32>
    %87 = vector.broadcast %69 : vector<1x32xf32> to vector<16x32xf32>
    %88 = arith.mulf %86, %87 : vector<16x32xf32>
    %89 = arith.addf %62, %88 : vector<16x32xf32>
    %c16_i32_29 = arith.constant 16 : i32
    %90 = vector.broadcast %c16_i32_29 : i32 to vector<1x32xi32>
    %91 = arith.cmpi sge, %34, %90 : vector<1x32xi32>
    %c24_i32 = arith.constant 24 : i32
    %92 = vector.broadcast %c24_i32 : i32 to vector<1x32xi32>
    %93 = arith.cmpi slt, %34, %92 : vector<1x32xi32>
    %94 = arith.andi %91, %93 : vector<1x32xi1>
    %95 = arith.extui %94 : vector<1x32xi1> to vector<1x32xi32>
    %96 = arith.sitofp %95 : vector<1x32xi32> to vector<1x32xf32>
    %97 = vector.broadcast %96 : vector<1x32xf32> to vector<16x32xf32>
    %98 = arith.mulf %19, %97 : vector<16x32xf32>
    %99 = arith.truncf %98 : vector<16x32xf32> to vector<16x32xbf16>
    %cst_30 = arith.constant dense<0.000000e+00> : vector<16x16xf32>
    %100 = tpu.matmul %99, %22, %cst_30 {dimension_numbers = #tpu.dot_dimension_numbers<[1], [1], [0], [0], [0, 0, 1, 0], [], []>} : vector<16x32xbf16>, vector<16x32xbf16>, vector<16x16xf32> -> vector<16x16xf32>
    %101 = arith.addf %100, %33 : vector<16x16xf32>
    %cst_31 = arith.constant dense<0xFF800000> : vector<16xf32>
    %102 = vector.multi_reduction <maximumf>, %101, %cst_31 [1] : vector<16x16xf32> to vector<16xf32>
    %103 = vector.shape_cast %102 : vector<16xf32> to vector<16x1xf32>
    %104 = vector.broadcast %103 : vector<16x1xf32> to vector<16x16xf32>
    %105 = arith.subf %101, %104 : vector<16x16xf32>
    %106 = math.exp %105 : vector<16x16xf32>
    %cst_32 = arith.constant dense<0.000000e+00> : vector<16xf32>
    %107 = vector.multi_reduction <add>, %106, %cst_32 [1] : vector<16x16xf32> to vector<16xf32>
    %108 = vector.shape_cast %107 : vector<16xf32> to vector<16x1xf32>
    %109 = tpu.reciprocal %108 {approx = true} : vector<16x1xf32> -> vector<16x1xf32>
    %110 = vector.broadcast %109 : vector<16x1xf32> to vector<16x16xf32>
    %111 = arith.mulf %106, %110 : vector<16x16xf32>
    %112 = arith.truncf %111 : vector<16x16xf32> to vector<16x16xbf16>
    %cst_33 = arith.constant dense<0.000000e+00> : vector<16x32xf32>
    %113 = tpu.matmul %112, %23, %cst_33 {dimension_numbers = #tpu.dot_dimension_numbers<[1], [0], [0], [1], [0, 0, 1, 1], [], []>} : vector<16x16xbf16>, vector<16x32xbf16>, vector<16x32xf32> -> vector<16x32xf32>
    %114 = vector.broadcast %96 : vector<1x32xf32> to vector<16x32xf32>
    %115 = arith.mulf %113, %114 : vector<16x32xf32>
    %116 = arith.addf %89, %115 : vector<16x32xf32>
    %c24_i32_34 = arith.constant 24 : i32
    %117 = vector.broadcast %c24_i32_34 : i32 to vector<1x32xi32>
    %118 = arith.cmpi sge, %34, %117 : vector<1x32xi32>
    %c32_i32 = arith.constant 32 : i32
    %119 = vector.broadcast %c32_i32 : i32 to vector<1x32xi32>
    %120 = arith.cmpi slt, %34, %119 : vector<1x32xi32>
    %121 = arith.andi %118, %120 : vector<1x32xi1>
    %122 = arith.extui %121 : vector<1x32xi1> to vector<1x32xi32>
    %123 = arith.sitofp %122 : vector<1x32xi32> to vector<1x32xf32>
    %124 = vector.broadcast %123 : vector<1x32xf32> to vector<16x32xf32>
    %125 = arith.mulf %19, %124 : vector<16x32xf32>
    %126 = arith.truncf %125 : vector<16x32xf32> to vector<16x32xbf16>
    %cst_35 = arith.constant dense<0.000000e+00> : vector<16x16xf32>
    %127 = tpu.matmul %126, %22, %cst_35 {dimension_numbers = #tpu.dot_dimension_numbers<[1], [1], [0], [0], [0, 0, 1, 0], [], []>} : vector<16x32xbf16>, vector<16x32xbf16>, vector<16x16xf32> -> vector<16x16xf32>
    %128 = arith.addf %127, %33 : vector<16x16xf32>
    %cst_36 = arith.constant dense<0xFF800000> : vector<16xf32>
    %129 = vector.multi_reduction <maximumf>, %128, %cst_36 [1] : vector<16x16xf32> to vector<16xf32>
    %130 = vector.shape_cast %129 : vector<16xf32> to vector<16x1xf32>
    %131 = vector.broadcast %130 : vector<16x1xf32> to vector<16x16xf32>
    %132 = arith.subf %128, %131 : vector<16x16xf32>
    %133 = math.exp %132 : vector<16x16xf32>
    %cst_37 = arith.constant dense<0.000000e+00> : vector<16xf32>
    %134 = vector.multi_reduction <add>, %133, %cst_37 [1] : vector<16x16xf32> to vector<16xf32>
    %135 = vector.shape_cast %134 : vector<16xf32> to vector<16x1xf32>
    %136 = tpu.reciprocal %135 {approx = true} : vector<16x1xf32> -> vector<16x1xf32>
    %137 = vector.broadcast %136 : vector<16x1xf32> to vector<16x16xf32>
    %138 = arith.mulf %133, %137 : vector<16x16xf32>
    %139 = arith.truncf %138 : vector<16x16xf32> to vector<16x16xbf16>
    %cst_38 = arith.constant dense<0.000000e+00> : vector<16x32xf32>
    %140 = tpu.matmul %139, %23, %cst_38 {dimension_numbers = #tpu.dot_dimension_numbers<[1], [0], [0], [1], [0, 0, 1, 1], [], []>} : vector<16x16xbf16>, vector<16x32xbf16>, vector<16x32xf32> -> vector<16x32xf32>
    %141 = vector.broadcast %123 : vector<1x32xf32> to vector<16x32xf32>
    %142 = arith.mulf %140, %141 : vector<16x32xf32>
    %143 = arith.addf %116, %142 : vector<16x32xf32>
    %144 = arith.truncf %143 : vector<16x32xf32> to vector<16x32xbf16>
    %cst_39 = arith.constant dense<0.000000e+00> : vector<16x32xf32>
    %145 = tpu.matmul %144, %11, %cst_39 {dimension_numbers = #tpu.dot_dimension_numbers<[1], [0], [0], [1], [0, 0, 1, 1], [], []>} : vector<16x32xbf16>, vector<32x32xbf16>, vector<16x32xf32> -> vector<16x32xf32>
    %146 = vector.broadcast %3 : vector<1x32xf32> to vector<16x32xf32>
    %147 = arith.addf %145, %146 : vector<16x32xf32>
    %148 = arith.addf %0, %147 : vector<16x32xf32>
    %cst_40 = arith.constant dense<0.000000e+00> : vector<16xf32>
    %149 = vector.multi_reduction <add>, %148, %cst_40 [1] : vector<16x32xf32> to vector<16xf32>
    %150 = vector.shape_cast %149 : vector<16xf32> to vector<16x1xf32>
    %cst_41 = arith.constant 3.200000e+01 : f32
    %151 = vector.broadcast %cst_41 : f32 to vector<16x1xf32>
    %152 = arith.divf %150, %151 : vector<16x1xf32>
    %153 = vector.broadcast %152 : vector<16x1xf32> to vector<16x32xf32>
    %154 = arith.subf %148, %153 : vector<16x32xf32>
    %155 = arith.mulf %154, %154 : vector<16x32xf32>
    %cst_42 = arith.constant dense<0.000000e+00> : vector<16xf32>
    %156 = vector.multi_reduction <add>, %155, %cst_42 [1] : vector<16x32xf32> to vector<16xf32>
    %157 = vector.shape_cast %156 : vector<16xf32> to vector<16x1xf32>
    %cst_43 = arith.constant 3.200000e+01 : f32
    %158 = vector.broadcast %cst_43 : f32 to vector<16x1xf32>
    %159 = arith.divf %157, %158 : vector<16x1xf32>
    %160 = vector.broadcast %152 : vector<16x1xf32> to vector<16x32xf32>
    %161 = arith.subf %148, %160 : vector<16x32xf32>
    %cst_44 = arith.constant 9.99999974E-6 : f32
    %162 = vector.broadcast %cst_44 : f32 to vector<16x1xf32>
    %163 = arith.addf %159, %162 : vector<16x1xf32>
    %164 = math.rsqrt %163 : vector<16x1xf32>
    %165 = vector.broadcast %164 : vector<16x1xf32> to vector<16x32xf32>
    %166 = arith.mulf %161, %165 : vector<16x32xf32>
    %167 = vector.broadcast %4 : vector<1x32xf32> to vector<16x32xf32>
    %168 = arith.mulf %166, %167 : vector<16x32xf32>
    %169 = vector.broadcast %5 : vector<1x32xf32> to vector<16x32xf32>
    %170 = arith.addf %168, %169 : vector<16x32xf32>
    %171 = arith.truncf %170 : vector<16x32xf32> to vector<16x32xbf16>
    %cst_45 = arith.constant dense<0.000000e+00> : vector<16x64xf32>
    %172 = tpu.matmul %171, %12, %cst_45 {dimension_numbers = #tpu.dot_dimension_numbers<[1], [0], [0], [1], [0, 0, 1, 1], [], []>} : vector<16x32xbf16>, vector<32x64xbf16>, vector<16x64xf32> -> vector<16x64xf32>
    %173 = vector.broadcast %6 : vector<1x64xf32> to vector<16x64xf32>
    %174 = arith.addf %172, %173 : vector<16x64xf32>
    %cst_46 = arith.constant 0.000000e+00 : f32
    %175 = vector.broadcast %cst_46 : f32 to vector<16x64xf32>
    %176 = arith.maximumf %174, %175 : vector<16x64xf32>
    %177 = arith.truncf %176 : vector<16x64xf32> to vector<16x64xbf16>
    %cst_47 = arith.constant dense<0.000000e+00> : vector<16x32xf32>
    %178 = tpu.matmul %177, %13, %cst_47 {dimension_numbers = #tpu.dot_dimension_numbers<[1], [0], [0], [1], [0, 0, 1, 1], [], []>} : vector<16x64xbf16>, vector<64x32xbf16>, vector<16x32xf32> -> vector<16x32xf32>
    %179 = vector.broadcast %7 : vector<1x32xf32> to vector<16x32xf32>
    %180 = arith.addf %178, %179 : vector<16x32xf32>
    %181 = arith.addf %170, %180 : vector<16x32xf32>
    %cst_48 = arith.constant dense<0.000000e+00> : vector<16xf32>
    %182 = vector.multi_reduction <add>, %181, %cst_48 [1] : vector<16x32xf32> to vector<16xf32>
    %183 = vector.shape_cast %182 : vector<16xf32> to vector<16x1xf32>
    %cst_49 = arith.constant 3.200000e+01 : f32
    %184 = vector.broadcast %cst_49 : f32 to vector<16x1xf32>
    %185 = arith.divf %183, %184 : vector<16x1xf32>
    %186 = vector.broadcast %185 : vector<16x1xf32> to vector<16x32xf32>
    %187 = arith.subf %181, %186 : vector<16x32xf32>
    %188 = arith.mulf %187, %187 : vector<16x32xf32>
    %cst_50 = arith.constant dense<0.000000e+00> : vector<16xf32>
    %189 = vector.multi_reduction <add>, %188, %cst_50 [1] : vector<16x32xf32> to vector<16xf32>
    %190 = vector.shape_cast %189 : vector<16xf32> to vector<16x1xf32>
    %cst_51 = arith.constant 3.200000e+01 : f32
    %191 = vector.broadcast %cst_51 : f32 to vector<16x1xf32>
    %192 = arith.divf %190, %191 : vector<16x1xf32>
    %193 = vector.broadcast %185 : vector<16x1xf32> to vector<16x32xf32>
    %194 = arith.subf %181, %193 : vector<16x32xf32>
    %cst_52 = arith.constant 9.99999974E-6 : f32
    %195 = vector.broadcast %cst_52 : f32 to vector<16x1xf32>
    %196 = arith.addf %192, %195 : vector<16x1xf32>
    %197 = math.rsqrt %196 : vector<16x1xf32>
    %198 = vector.broadcast %197 : vector<16x1xf32> to vector<16x32xf32>
    %199 = arith.mulf %194, %198 : vector<16x32xf32>
    %200 = vector.broadcast %8 : vector<1x32xf32> to vector<16x32xf32>
    %201 = arith.mulf %199, %200 : vector<16x32xf32>
    %202 = vector.broadcast %9 : vector<1x32xf32> to vector<16x32xf32>
    %203 = arith.addf %201, %202 : vector<16x32xf32>
    %c0_53 = arith.constant 0 : index
    %c0_54 = arith.constant 0 : index
    %204 = vector.load %arg3[%c0_53, %c0_54] : memref<16x32xf32, #tpu.memory_space<vmem>>, vector<16x32xf32>
    tpu.vector_store %arg3[%c0_53, %c0_54], %203 {strides = array<i32>} : memref<16x32xf32, #tpu.memory_space<vmem>>, vector<16x32xf32>,
    return
  }
}

</mosaic_0001>

<llo_original>
// kernel: tpu_custom_call.1
$region0: #{tpu_custom_call.1}
  #allocation0 [shape = 'u32[]', space=smem, size = 0x4, offset = 0x4, fixed_abs, tag = 'smem constant byte address 0x4 - core index']
  #allocation1 [shape = 'u32[72,128]{1,0:T(1,128)}', space=vmem, size = 0x9000, scoped, tag = 'internal scratch']
  %s0 = inlined_call_operand.hbm [shape: f32[16,32], index: 0, kind: input, shape index: {}]
  %s1 = inlined_call_operand.hbm [shape: f32[8,128], index: 1, kind: input, shape index: {}]
  %s2 = inlined_call_operand.hbm [shape: bf16[160,128], index: 2, kind: input, shape index: {}]
  %s3 = inlined_call_operand.hbm [shape: f32[16,32], index: 3, kind: output, shape index: {}]
  %s4 = sld [smem:[#allocation0]]
  $region34: #{tpu_custom_call.1} parent=0
    _
  %s6 = ssub.s32 1, %s4
  %s7 = scalar_select 0, %s6, %s4
  $region1: #{tpu_custom_call.1} parent=0
    #allocation2 [shape = 'u8[8192]{0}', space=vmem, size = 0x2000, scoped, tag = 'input window, operand 0, single buffered']
    #allocation3 [shape = 's32[1]{0}', space=sflag, size = 0x4, scoped, tag = 'scoped memory for tpu_custom_call.1']
    #allocation4 [shape = 's32[1]{0}', space=sflag, size = 0x4, scoped, tag = 'scoped memory for tpu_custom_call.1']
    #allocation5 [shape = 'u8[4096]{0}', space=vmem, size = 0x1000, scoped, tag = 'input window, operand 1, single buffered']
    #allocation6 [shape = 's32[1]{0}', space=sflag, size = 0x4, scoped, tag = 'scoped memory for tpu_custom_call.1']
    #allocation7 [shape = 'u8[40960]{0}', space=vmem, size = 0xa000, scoped, tag = 'input window, operand 2, single buffered']
    #allocation8 [shape = 'u8[8192]{0}', space=vmem, size = 0x2000, scoped, tag = 'output window, operand 0, single buffered']
    %8 = vsyncpa [#allocation3], 0
    %9 = vsyncpa [#allocation6], 0
    %10 = vsyncpa [#allocation4], 0
    // Predicated region
    $region2: #{tpu_custom_call.1} parent=1 // pred_check
      _
    $region3: #{tpu_custom_call.1} parent=1 // pred_check_branch
      %12 = sbr.rel (0) target = $region5
    $region4: #{tpu_custom_call.1} parent=1 // pred_region
      %14 = vsyncadd [#allocation3], 0
      %s15 = sshll.u32 %s0, 4
      %s16 = int_to_ptr.hbm [resolvable:$true] %s15
      %s17 = sshll.u32 [#allocation2], 4
      %s18 = int_to_ptr.vmem [resolvable:$true] %s17
      %23 = dma.hbm_to_vmem [thread:$0]  %s16, 256, %s18, [#allocation3], 128, 128, 8
    $region5: #{tpu_custom_call.1} parent=1 // pred_fallthru
      _
    // Predicated region
    $region6: #{tpu_custom_call.1} parent=1 // pred_check
      _
    $region7: #{tpu_custom_call.1} parent=1 // pred_check_branch
      %25 = sbr.rel (0) target = $region9
    $region8: #{tpu_custom_call.1} parent=1 // pred_region
      %27 = vsyncadd [#allocation6], 0
      %s29 = sshll.u32 %s1, 4
      %s30 = int_to_ptr.hbm [resolvable:$true] %s29
      %s31 = sshll.u32 [#allocation5], 4
      %s32 = int_to_ptr.vmem [resolvable:$true] %s31
      %34 = dma.hbm_to_vmem [thread:$0]  %s30, 128, %s32, [#allocation6]
    $region9: #{tpu_custom_call.1} parent=1 // pred_fallthru
      _
    // Predicated region
    $region10: #{tpu_custom_call.1} parent=1 // pred_check
      _
    $region11: #{tpu_custom_call.1} parent=1 // pred_check_branch
      %36 = sbr.rel (0) target = $region13
    $region12: #{tpu_custom_call.1} parent=1 // pred_region
      %38 = vsyncadd [#allocation6], 0
      %s39 = sshll.u32 %s2, 4
      %s40 = int_to_ptr.hbm [resolvable:$true] %s39
      %s41 = sshll.u32 [#allocation7], 4
      %s42 = int_to_ptr.vmem [resolvable:$true] %s41
      %47 = dma.hbm_to_vmem [thread:$0]  %s40, 1280, %s42, [#allocation6], 64, 64, 4
    $region13: #{tpu_custom_call.1} parent=1 // pred_fallthru
      _
    // Predicated region
    $region14: #{tpu_custom_call.1} parent=1 // pred_check
      _
    $region15: #{tpu_custom_call.1} parent=1 // pred_check_branch
      %49 = sbr.rel (0) target = $region17
    $region16: #{tpu_custom_call.1} parent=1 // pred_region
      %51 = dma.done [#allocation3], 256
    $region17: #{tpu_custom_call.1} parent=1 // pred_fallthru
      _
    // Predicated region
    $region18: #{tpu_custom_call.1} parent=1 // pred_check
      _
    $region19: #{tpu_custom_call.1} parent=1 // pred_check_branch
      %53 = sbr.rel (0) target = $region21
    $region20: #{tpu_custom_call.1} parent=1 // pred_region
      %55 = dma.done [#allocation6], 128
    $region21: #{tpu_custom_call.1} parent=1 // pred_fallthru
      _
    // Predicated region
    $region22: #{tpu_custom_call.1} parent=1 // pred_check
      _
    $region23: #{tpu_custom_call.1} parent=1 // pred_check_branch
      %57 = sbr.rel (0) target = $region25
    $region24: #{tpu_custom_call.1} parent=1 // pred_region
      %59 = dma.done [#allocation6], 1280
    $region25: #{tpu_custom_call.1} parent=1 // pred_fallthru
      _
    %v61 = vld [vmem:[#allocation2] sm:$0xff]
    %v62 = vld [vmem:[#allocation2 + $0x8] sm:$0xff]
    %v63 = vpack.c.bf16 %v62, %v61
    %v64 = vld [vmem:[#allocation5] sm:$0x1]
    %v65 = vld [vmem:[#allocation5 + $0x1] sm:$0x1]
    %v66 = vld [vmem:[#allocation5 + $0x2] sm:$0x1]
    %v67 = vld [vmem:[#allocation5 + $0x3] sm:$0x1]
    %v68 = vld [vmem:[#allocation5 + $0x4] sm:$0x1]
    %v69 = vld [vmem:[#allocation5 + $0x5] sm:$0x1]
    %v70 = vld [vmem:[#allocation5 + $0x6] sm:$0x1]
    %v71 = vld [vmem:[#allocation5 + $0x7] sm:$0x1]
    %v72 = vld [vmem:[#allocation7] sm:$0xf]
    %v73 = vld [vmem:[#allocation7 + $0x4] sm:$0xf]
    %v74 = vld [vmem:[#allocation7 + $0x8] sm:$0xf]
    %v75 = vld [vmem:[#allocation7 + $0xc] sm:$0xf]
    %v76 = vld [vmem:[#allocation7 + $0x10] sm:$0xf]
    %v77 = vld [vmem:[#allocation7 + $0x14] sm:$0xf]
    %v78 = vld [vmem:[#allocation7 + $0x18] sm:$0xf]
    %v79 = vld [vmem:[#allocation7 + $0x1c] sm:$0xf]
    %v80 = vld [vmem:[#allocation7 + $0x20] sm:$0xf]
    %v81 = vld [vmem:[#allocation7 + $0x24] sm:$0xf]
    %v82 = vld [vmem:[#allocation7 + $0x28] sm:$0xf]
    %v83 = vld [vmem:[#allocation7 + $0x2c] sm:$0xf]
    %v84 = vld [vmem:[#allocation7 + $0x30] sm:$0xf]
    %v85 = vld [vmem:[#allocation7 + $0x34] sm:$0xf]
    %v86 = vld [vmem:[#allocation7 + $0x38] sm:$0xf]
    %v87 = vld [vmem:[#allocation7 + $0x3c] sm:$0xf]
    %v88 = vld [vmem:[#allocation7 + $0x40] sm:$0xf]
    %v89 = vld [vmem:[#allocation7 + $0x44] sm:$0xf]
    %v90 = vld [vmem:[#allocation7 + $0x48] sm:$0xf]
    %v91 = vld [vmem:[#allocation7 + $0x4c] sm:$0xf]
    %v92 = vperm.slane %v64, 0
    %v97 = vunpack.c.l.b16 %v72
    %v98 = vunpack.c.l.b16 %v73
    %v99 = vunpack.c.l.b16 %v74
    %v100 = vunpack.c.l.b16 %v75
    %v101 = vpack.c.b16 %v98, %v97
    %v102 = vpack.c.b16 %v100, %v99
    %vm105 = vcmask 261120
    %v107 = vsel %vm105, %v63, 0
    %109 = vmatpush.bf16.msra.mxu0 0
    %110 = vmatpush.bf16.msra.mxu0 0
    %111 = vmatpush.bf16.msra.mxu0 0
    %112 = vmatpush.bf16.msra.mxu0 0
    %113 = vmatpush.bf16.msra.mxu0 0
    %114 = vmatpush.bf16.msra.mxu0 0
    %115 = vmatpush.bf16.msra.mxu0 %v102
    %116 = vmatpush.bf16.msra.mxu0 %v101
    %117 = vmatmul.bf16.gmra.mxu0 %v107
    %v118 = vpop.f32.mrf.mxu0
    %v119 = vadd.f32 %v92, %v118
    %v120 = vpop.f32.mrf.mxu0
    %v121 = vadd.f32 %v92, %v120
    %122 = vdwg.mxu0
    %v123 = vmul.f32 %v119, 0.35355338
    %v124 = vmul.f32 %v121, 0.35355338
    %v125 = vpack.c.bf16 %v121, %v119
    %v126 = vlaneseq
    %v127 = vshrl.u32 %v126, 7
    %v128 = vadd.s32 %v127, 8
    %v129 = vlaneseq
    %v130 = vand.u32 %v129, 127
    %v131 = vand.u32 %v127, 1
    %v132 = vand.u32 %v128, 1
    %v133 = vand.u32 %v130, 1
    %vm134 = vcmp.eq.s32.totalorder %v131, %v133
    %vm135 = vcmp.eq.s32.totalorder %v132, %v133
    %v136 = vsel %vm134, 0.0, -1e+30
    %v137 = vsel %vm135, 0.0, -1e+30
    %vm138 = vcmp.ge.s32.totalorder %v130, 0
    %vm139 = vcmp.lt.s32.totalorder %v130, 8
    %vm140 = vmand %vm138, %vm139
    %v141 = vsel %vm140, 1, 0
    %v142 = vcvt.s32.f32 %v141
    %v143 = vmul.f32 %v123, %v142
    %v144 = vmul.f32 %v124, %v142
    %v145 = vpack.c.bf16 %v144, %v143
    %147 = vrot.lane.b32.xlu0 %v125, 96
    %v148 = vpop.permute.xlu0 %147
    %v150 = vsel %vm105, %v145, 0
    %v153 = vsel %vm105, %v148, 0
    %155 = vmatpush.bf16.xpose.msra.mxu0 0
    %156 = vmatpush.bf16.xpose.msra.mxu0 0
    %157 = vmatpush.bf16.xpose.msra.mxu0 0
    %158 = vmatpush.bf16.xpose.msra.mxu0 0
    %159 = vmatpush.bf16.xpose.msra.mxu0 0
    %160 = vmatpush.bf16.xpose.msra.mxu0 0
    %161 = vmatpush.bf16.xpose.msra.mxu0 0
    %162 = vmatpush.bf16.xpose.msra.mxu0 %v153
    %163 = vmatmul.bf16.gmra.mxu0 %v150
    %v164 = vpop.f32.mrf.mxu0
    %v165 = vadd.f32 %v136, %v164
    %v166 = vpop.f32.mrf.mxu0
    %v167 = vadd.f32 %v137, %v166
    %168 = vdwg.mxu0
    %vm169 = vcmask 130048
    %v170 = vsel %vm169, %v165, -inf
    %171 = vmax.xlane.f32.xlu0 %v170
    %v172 = vpop.xlane.xlu0 %171
    %v173 = vsel %vm169, %v167, -inf
    %174 = vmax.xlane.f32.xlu0 %v173
    %v175 = vpop.xlane.xlu0 %174
    %v176 = vsub.f32 %v165, %v172
    %v177 = vsub.f32 %v167, %v175
    %v178 = vmul.f32 %v176, 1.442695
    %v179 = vpow.pop %v178
    %v180 = vmul.f32 %v177, 1.442695
    %v181 = vpow.pop %v180
    %v182 = vsel %vm169, %v179, 0.0
    %183 = vadd.xlane.f32.xlu0 %v182
    %v184 = vpop.xlane.xlu0 %183
    %v185 = vsel %vm169, %v181, 0.0
    %186 = vadd.xlane.f32.xlu0 %v185
    %v187 = vpop.xlane.xlu0 %186
    %v188 = vrcp.pop %v184
    %v189 = vrcp.pop %v187
    %v190 = vmul.f32 %v179, %v188
    %v191 = vmul.f32 %v181, %v189
    %v192 = vpack.c.bf16 %v191, %v190
    %193 = vrot.lane.b32.xlu0 %v125, 64
    %v194 = vpop.permute.xlu0 %193
    %v197 = vsel %vm169, %v192, 0
    %199 = vmatpush.bf16.msra.mxu0 0
    %200 = vmatpush.bf16.msra.mxu0 0
    %201 = vmatpush.bf16.msra.mxu0 0
    %202 = vmatpush.bf16.msra.mxu0 0
    %203 = vmatpush.bf16.msra.mxu0 0
    %204 = vmatpush.bf16.msra.mxu0 0
    %205 = vmatpush.bf16.msra.mxu0 0
    %206 = vmatpush.bf16.msra.mxu0 %v194
    %207 = vmatmul.bf16.gmra.mxu0 %v197
    %v208 = vpop.f32.mrf.mxu0
    %v209 = vadd.f32 0.0, %v208
    %v210 = vpop.f32.mrf.mxu0
    %v211 = vadd.f32 0.0, %v210
    %212 = vdwg.mxu0
    %v213 = vmul.f32 %v209, %v142
    %v214 = vmul.f32 %v211, %v142
    %v215 = vadd.f32 %v213, 0.0
    %v216 = vadd.f32 %v214, 0.0
    %vm217 = vcmp.ge.s32.totalorder %v130, 8
    %vm218 = vcmp.lt.s32.totalorder %v130, 16
    %vm219 = vmand %vm217, %vm218
    %v220 = vsel %vm219, 1, 0
    %v221 = vcvt.s32.f32 %v220
    %v222 = vmul.f32 %v123, %v221
    %v223 = vmul.f32 %v124, %v221
    %v224 = vpack.c.bf16 %v223, %v222
    %v226 = vsel %vm105, %v224, 0
    %228 = vmatpush.bf16.xpose.msra.mxu0 0
    %229 = vmatpush.bf16.xpose.msra.mxu0 0
    %230 = vmatpush.bf16.xpose.msra.mxu0 0
    %231 = vmatpush.bf16.xpose.msra.mxu0 0
    %232 = vmatpush.bf16.xpose.msra.mxu0 0
    %233 = vmatpush.bf16.xpose.msra.mxu0 0
    %234 = vmatpush.bf16.xpose.msra.mxu0 0
    %235 = vmatpush.bf16.xpose.msra.mxu0 %v153
    %236 = vmatmul.bf16.gmra.mxu0 %v226
    %v237 = vpop.f32.mrf.mxu0
    %v238 = vadd.f32 %v136, %v237
    %v239 = vpop.f32.mrf.mxu0
    %v240 = vadd.f32 %v137, %v239
    %241 = vdwg.mxu0
    %v242 = vsel %vm169, %v238, -inf
    %243 = vmax.xlane.f32.xlu0 %v242
    %v244 = vpop.xlane.xlu0 %243
    %v245 = vsel %vm169, %v240, -inf
    %246 = vmax.xlane.f32.xlu0 %v245
    %v247 = vpop.xlane.xlu0 %246
    %v248 = vsub.f32 %v238, %v244
    %v249 = vsub.f32 %v240, %v247
    %v250 = vmul.f32 %v248, 1.442695
    %v251 = vpow.pop %v250
    %v252 = vmul.f32 %v249, 1.442695
    %v253 = vpow.pop %v252
    %v254 = vsel %vm169, %v251, 0.0
    %255 = vadd.xlane.f32.xlu0 %v254
    %v256 = vpop.xlane.xlu0 %255
    %v257 = vsel %vm169, %v253, 0.0
    %258 = vadd.xlane.f32.xlu0 %v257
    %v259 = vpop.xlane.xlu0 %258
    %v260 = vrcp.pop %v256
    %v261 = vrcp.pop %v259
    %v262 = vmul.f32 %v251, %v260
    %v263 = vmul.f32 %v253, %v261
    %v264 = vpack.c.bf16 %v263, %v262
    %v266 = vsel %vm169, %v264, 0
    %268 = vmatpush.bf16.msra.mxu0 0
    %269 = vmatpush.bf16.msra.mxu0 0
    %270 = vmatpush.bf16.msra.mxu0 0
    %271 = vmatpush.bf16.msra.mxu0 0
    %272 = vmatpush.bf16.msra.mxu0 0
    %273 = vmatpush.bf16.msra.mxu0 0
    %274 = vmatpush.bf16.msra.mxu0 0
    %275 = vmatpush.bf16.msra.mxu0 %v194
    %276 = vmatmul.bf16.gmra.mxu0 %v266
    %v277 = vpop.f32.mrf.mxu0
    %v278 = vadd.f32 0.0, %v277
    %v279 = vpop.f32.mrf.mxu0
    %v280 = vadd.f32 0.0, %v279
    %281 = vdwg.mxu0
    %v282 = vmul.f32 %v278, %v221
    %v283 = vmul.f32 %v280, %v221
    %v284 = vadd.f32 %v215, %v282
    %v285 = vadd.f32 %v216, %v283
    %vm286 = vcmp.ge.s32.totalorder %v130, 16
    %vm287 = vcmp.lt.s32.totalorder %v130, 24
    %vm288 = vmand %vm286, %vm287
    %v289 = vsel %vm288, 1, 0
    %v290 = vcvt.s32.f32 %v289
    %v291 = vmul.f32 %v123, %v290
    %v292 = vmul.f32 %v124, %v290
    %v293 = vpack.c.bf16 %v292, %v291
    %v295 = vsel %vm105, %v293, 0
    %297 = vmatpush.bf16.xpose.msra.mxu0 0
    %298 = vmatpush.bf16.xpose.msra.mxu0 0
    %299 = vmatpush.bf16.xpose.msra.mxu0 0
    %300 = vmatpush.bf16.xpose.msra.mxu0 0
    %301 = vmatpush.bf16.xpose.msra.mxu0 0
    %302 = vmatpush.bf16.xpose.msra.mxu0 0
    %303 = vmatpush.bf16.xpose.msra.mxu0 0
    %304 = vmatpush.bf16.xpose.msra.mxu0 %v153
    %305 = vmatmul.bf16.gmra.mxu0 %v295
    %v306 = vpop.f32.mrf.mxu0
    %v307 = vadd.f32 %v136, %v306
    %v308 = vpop.f32.mrf.mxu0
    %v309 = vadd.f32 %v137, %v308
    %310 = vdwg.mxu0
    %v311 = vsel %vm169, %v307, -inf
    %312 = vmax.xlane.f32.xlu0 %v311
    %v313 = vpop.xlane.xlu0 %312
    %v314 = vsel %vm169, %v309, -inf
    %315 = vmax.xlane.f32.xlu0 %v314
    %v316 = vpop.xlane.xlu0 %315
    %v317 = vsub.f32 %v307, %v313
    %v318 = vsub.f32 %v309, %v316
    %v319 = vmul.f32 %v317, 1.442695
    %v320 = vpow.pop %v319
    %v321 = vmul.f32 %v318, 1.442695
    %v322 = vpow.pop %v321
    %v323 = vsel %vm169, %v320, 0.0
    %324 = vadd.xlane.f32.xlu0 %v323
    %v325 = vpop.xlane.xlu0 %324
    %v326 = vsel %vm169, %v322, 0.0
    %327 = vadd.xlane.f32.xlu0 %v326
    %v328 = vpop.xlane.xlu0 %327
    %v329 = vrcp.pop %v325
    %v330 = vrcp.pop %v328
    %v331 = vmul.f32 %v320, %v329
    %v332 = vmul.f32 %v322, %v330
    %v333 = vpack.c.bf16 %v332, %v331
    %v335 = vsel %vm169, %v333, 0
    %337 = vmatpush.bf16.msra.mxu0 0
    %338 = vmatpush.bf16.msra.mxu0 0
    %339 = vmatpush.bf16.msra.mxu0 0
    %340 = vmatpush.bf16.msra.mxu0 0
    %341 = vmatpush.bf16.msra.mxu0 0
    %342 = vmatpush.bf16.msra.mxu0 0
    %343 = vmatpush.bf16.msra.mxu0 0
    %344 = vmatpush.bf16.msra.mxu0 %v194
    %345 = vmatmul.bf16.gmra.mxu0 %v335
    %v346 = vpop.f32.mrf.mxu0
    %v347 = vadd.f32 0.0, %v346
    %v348 = vpop.f32.mrf.mxu0
    %v349 = vadd.f32 0.0, %v348
    %350 = vdwg.mxu0
    %v351 = vmul.f32 %v347, %v290
    %v352 = vmul.f32 %v349, %v290
    %v353 = vadd.f32 %v284, %v351
    %v354 = vadd.f32 %v285, %v352
    %vm355 = vcmp.ge.s32.totalorder %v130, 24
    %vm356 = vcmp.lt.s32.totalorder %v130, 32
    %vm357 = vmand %vm355, %vm356
    %v358 = vsel %vm357, 1, 0
    %v359 = vcvt.s32.f32 %v358
    %v360 = vmul.f32 %v123, %v359
    %v361 = vmul.f32 %v124, %v359
    %v362 = vpack.c.bf16 %v361, %v360
    %v364 = vsel %vm105, %v362, 0
    %366 = vmatpush.bf16.xpose.msra.mxu0 0
    %367 = vmatpush.bf16.xpose.msra.mxu0 0
    %368 = vmatpush.bf16.xpose.msra.mxu0 0
    %369 = vmatpush.bf16.xpose.msra.mxu0 0
    %370 = vmatpush.bf16.xpose.msra.mxu0 0
    %371 = vmatpush.bf16.xpose.msra.mxu0 0
    %372 = vmatpush.bf16.xpose.msra.mxu0 0
    %373 = vmatpush.bf16.xpose.msra.mxu0 %v153
    %374 = vmatmul.bf16.gmra.mxu0 %v364
    %v375 = vpop.f32.mrf.mxu0
    %v376 = vadd.f32 %v136, %v375
    %v377 = vpop.f32.mrf.mxu0
    %v378 = vadd.f32 %v137, %v377
    %379 = vdwg.mxu0
    %v380 = vsel %vm169, %v376, -inf
    %381 = vmax.xlane.f32.xlu0 %v380
    %v382 = vpop.xlane.xlu0 %381
    %v383 = vsel %vm169, %v378, -inf
    %384 = vmax.xlane.f32.xlu0 %v383
    %v385 = vpop.xlane.xlu0 %384
    %v386 = vsub.f32 %v376, %v382
    %v387 = vsub.f32 %v378, %v385
    %v388 = vmul.f32 %v386, 1.442695
    %v389 = vpow.pop %v388
    %v390 = vmul.f32 %v387, 1.442695
    %v391 = vpow.pop %v390
    %v392 = vsel %vm169, %v389, 0.0
    %393 = vadd.xlane.f32.xlu0 %v392
    %v394 = vpop.xlane.xlu0 %393
    %v395 = vsel %vm169, %v391, 0.0
    %396 = vadd.xlane.f32.xlu0 %v395
    %v397 = vpop.xlane.xlu0 %396
    %v398 = vrcp.pop %v394
    %v399 = vrcp.pop %v397
    %v400 = vmul.f32 %v389, %v398
    %v401 = vmul.f32 %v391, %v399
    %v402 = vpack.c.bf16 %v401, %v400
    %v404 = vsel %vm169, %v402, 0
    %406 = vmatpush.bf16.msra.mxu0 0
    %407 = vmatpush.bf16.msra.mxu0 0
    %408 = vmatpush.bf16.msra.mxu0 0
    %409 = vmatpush.bf16.msra.mxu0 0
    %410 = vmatpush.bf16.msra.mxu0 0
    %411 = vmatpush.bf16.msra.mxu0 0
    %412 = vmatpush.bf16.msra.mxu0 0
    %413 = vmatpush.bf16.msra.mxu0 %v194
    %414 = vmatmul.bf16.gmra.mxu0 %v404
    %v415 = vpop.f32.mrf.mxu0
    %v416 = vadd.f32 0.0, %v415
    %v417 = vpop.f32.mrf.mxu0
    %v418 = vadd.f32 0.0, %v417
    %419 = vdwg.mxu0
    %v420 = vmul.f32 %v416, %v359
    %v421 = vmul.f32 %v418, %v359
    %v422 = vadd.f32 %v353, %v420
    %v423 = vadd.f32 %v354, %v421
    %v424 = vpack.c.bf16 %v423, %v422
    %v425 = vperm.slane %v65, 0
    %v430 = vunpack.c.l.b16 %v76
    %v431 = vunpack.c.l.b16 %v77
    %v432 = vunpack.c.l.b16 %v78
    %v433 = vunpack.c.l.b16 %v79
    %v434 = vpack.c.b16 %v431, %v430
    %v435 = vpack.c.b16 %v433, %v432
    %v439 = vsel %vm105, %v424, 0
    %441 = vmatpush.bf16.msra.mxu0 0
    %442 = vmatpush.bf16.msra.mxu0 0
    %443 = vmatpush.bf16.msra.mxu0 0
    %444 = vmatpush.bf16.msra.mxu0 0
    %445 = vmatpush.bf16.msra.mxu0 0
    %446 = vmatpush.bf16.msra.mxu0 0
    %447 = vmatpush.bf16.msra.mxu0 %v435
    %448 = vmatpush.bf16.msra.mxu0 %v434
    %449 = vmatmul.bf16.gmra.mxu0 %v439
    %v450 = vpop.f32.mrf.mxu0
    %v451 = vadd.f32 %v425, %v450
    %v452 = vpop.f32.mrf.mxu0
    %v453 = vadd.f32 %v425, %v452
    %454 = vdwg.mxu0
    %v455 = vadd.f32 %v61, %v451
    %v456 = vadd.f32 %v62, %v453
    %v457 = vsel %vm105, %v455, 0.0
    %458 = vadd.xlane.f32.xlu0 %v457
    %v459 = vpop.xlane.xlu0 %458
    %v460 = vsel %vm105, %v456, 0.0
    %461 = vadd.xlane.f32.xlu0 %v460
    %v462 = vpop.xlane.xlu0 %461
    %v463 = vrcp.pop 32.0
    %v464 = vmul.f32 32.0, %v463
    %v465 = vsub.f32 1.0, %v464
    %v466 = vmul.f32 %v463, %v465
    %v467 = vadd.f32 %v463, %v466
    %vm468 = vweird.f32 %v463
    %v469 = vsel %vm468, %v463, %v467
    %v470 = vmul.f32 %v459, %v469
    %v471 = vmul.f32 %v462, %v469
    %v472 = vsub.f32 %v455, %v470
    %v473 = vsub.f32 %v456, %v471
    %v474 = vmul.f32 %v472, %v472
    %v475 = vmul.f32 %v473, %v473
    %v476 = vsel %vm105, %v474, 0.0
    %477 = vadd.xlane.f32.xlu0 %v476
    %v478 = vpop.xlane.xlu0 %477
    %v479 = vsel %vm105, %v475, 0.0
    %480 = vadd.xlane.f32.xlu0 %v479
    %v481 = vpop.xlane.xlu0 %480
    %v482 = vmul.f32 %v478, %v469
    %v483 = vmul.f32 %v481, %v469
    %v484 = vadd.f32 %v482, 1e-05
    %v485 = vadd.f32 %v483, 1e-05
    %v486 = vrsqrt.pop %v484
    %v487 = vmul.f32 %v486, %v484
    %v488 = vmul.f32 %v487, %v486
    %v489 = vmul.f32 0.5, %v488
    %v490 = vsub.f32 1.5, %v489
    %v491 = vmul.f32 %v486, %v490
    %vm492 = vweird.f32 %v484
    %vm493 = vweird.f32 %v486
    %vm494 = vmor %vm492, %vm493
    %v495 = vsel %vm494, %v486, %v491
    %v496 = vrsqrt.pop %v485
    %v497 = vmul.f32 %v496, %v485
    %v498 = vmul.f32 %v497, %v496
    %v499 = vmul.f32 0.5, %v498
    %v500 = vsub.f32 1.5, %v499
    %v501 = vmul.f32 %v496, %v500
    %vm502 = vweird.f32 %v485
    %vm503 = vweird.f32 %v496
    %vm504 = vmor %vm502, %vm503
    %v505 = vsel %vm504, %v496, %v501
    %v506 = vmul.f32 %v472, %v495
    %v507 = vmul.f32 %v473, %v505
    %v508 = vperm.slane %v66, 0
    %v509 = vmul.f32 %v506, %v508
    %v510 = vmul.f32 %v507, %v508
    %v511 = vperm.slane %v67, 0
    %v512 = vadd.f32 %v509, %v511
    %v513 = vadd.f32 %v510, %v511
    %v514 = vpack.c.bf16 %v513, %v512
    %v515 = vperm.slane %v68, 0
    %v520 = vunpack.c.l.b16 %v80
    %v521 = vunpack.c.l.b16 %v81
    %v522 = vunpack.c.l.b16 %v82
    %v523 = vunpack.c.l.b16 %v83
    %v524 = vpack.c.b16 %v521, %v520
    %v525 = vpack.c.b16 %v523, %v522
    %v529 = vsel %vm105, %v514, 0
    %531 = vmatpush.bf16.msra.mxu0 0
    %532 = vmatpush.bf16.msra.mxu0 0
    %533 = vmatpush.bf16.msra.mxu0 0
    %534 = vmatpush.bf16.msra.mxu0 0
    %535 = vmatpush.bf16.msra.mxu0 0
    %536 = vmatpush.bf16.msra.mxu0 0
    %537 = vmatpush.bf16.msra.mxu0 %v525
    %538 = vmatpush.bf16.msra.mxu0 %v524
    %539 = vmatmul.bf16.gmra.mxu0 %v529
    %v540 = vpop.f32.mrf.mxu0
    %v541 = vadd.f32 %v515, %v540
    %v542 = vpop.f32.mrf.mxu0
    %v543 = vadd.f32 %v515, %v542
    %544 = vdwg.mxu0
    %v545 = vmax.f32 %v541, 0.0
    %v546 = vmax.f32 %v543, 0.0
    %v547 = vpack.c.bf16 %v546, %v545
    %v548 = vperm.slane %v69, 0
    %v557 = vunpack.c.l.b16 %v84
    %v558 = vunpack.c.l.b16 %v85
    %v559 = vunpack.c.l.b16 %v86
    %v560 = vunpack.c.l.b16 %v87
    %v561 = vunpack.c.l.b16 %v88
    %v562 = vunpack.c.l.b16 %v89
    %v563 = vunpack.c.l.b16 %v90
    %v564 = vunpack.c.l.b16 %v91
    %v565 = vpack.c.b16 %v558, %v557
    %v566 = vpack.c.b16 %v560, %v559
    %v567 = vpack.c.b16 %v562, %v561
    %v568 = vpack.c.b16 %v564, %v563
    %vm573 = vcmask 523264
    %v575 = vsel %vm573, %v547, 0
    %577 = vmatpush.bf16.msra.mxu0 0
    %578 = vmatpush.bf16.msra.mxu0 0
    %579 = vmatpush.bf16.msra.mxu0 0
    %580 = vmatpush.bf16.msra.mxu0 0
    %581 = vmatpush.bf16.msra.mxu0 %v568
    %582 = vmatpush.bf16.msra.mxu0 %v567
    %583 = vmatpush.bf16.msra.mxu0 %v566
    %584 = vmatpush.bf16.msra.mxu0 %v565
    %585 = vmatmul.bf16.gmra.mxu0 %v575
    %v586 = vpop.f32.mrf.mxu0
    %v587 = vadd.f32 %v548, %v586
    %v588 = vpop.f32.mrf.mxu0
    %v589 = vadd.f32 %v548, %v588
    %590 = vdwg.mxu0
    %v591 = vadd.f32 %v512, %v587
    %v592 = vadd.f32 %v513, %v589
    %v593 = vsel %vm105, %v591, 0.0
    %594 = vadd.xlane.f32.xlu0 %v593
    %v595 = vpop.xlane.xlu0 %594
    %v596 = vsel %vm105, %v592, 0.0
    %597 = vadd.xlane.f32.xlu0 %v596
    %v598 = vpop.xlane.xlu0 %597
    %v599 = vmul.f32 %v595, %v469
    %v600 = vmul.f32 %v598, %v469
    %v601 = vsub.f32 %v591, %v599
    %v602 = vsub.f32 %v592, %v600
    %v603 = vmul.f32 %v601, %v601
    %v604 = vmul.f32 %v602, %v602
    %v605 = vsel %vm105, %v603, 0.0
    %606 = vadd.xlane.f32.xlu0 %v605
    %v607 = vpop.xlane.xlu0 %606
    %v608 = vsel %vm105, %v604, 0.0
    %609 = vadd.xlane.f32.xlu0 %v608
    %v610 = vpop.xlane.xlu0 %609
    %v611 = vmul.f32 %v607, %v469
    %v612 = vmul.f32 %v610, %v469
    %v613 = vadd.f32 %v611, 1e-05
    %v614 = vadd.f32 %v612, 1e-05
    %v615 = vrsqrt.pop %v613
    %v616 = vmul.f32 %v615, %v613
    %v617 = vmul.f32 %v616, %v615
    %v618 = vmul.f32 0.5, %v617
    %v619 = vsub.f32 1.5, %v618
    %v620 = vmul.f32 %v615, %v619
    %vm621 = vweird.f32 %v613
    %vm622 = vweird.f32 %v615
    %vm623 = vmor %vm621, %vm622
    %v624 = vsel %vm623, %v615, %v620
    %v625 = vrsqrt.pop %v614
    %v626 = vmul.f32 %v625, %v614
    %v627 = vmul.f32 %v626, %v625
    %v628 = vmul.f32 0.5, %v627
    %v629 = vsub.f32 1.5, %v628
    %v630 = vmul.f32 %v625, %v629
    %vm631 = vweird.f32 %v614
    %vm632 = vweird.f32 %v625
    %vm633 = vmor %vm631, %vm632
    %v634 = vsel %vm633, %v625, %v630
    %v635 = vmul.f32 %v601, %v624
    %v636 = vmul.f32 %v602, %v634
    %v637 = vperm.slane %v70, 0
    %v638 = vmul.f32 %v635, %v637
    %v639 = vmul.f32 %v636, %v637
    %v640 = vperm.slane %v71, 0
    %v641 = vadd.f32 %v638, %v640
    %v642 = vadd.f32 %v639, %v640
    %643 = vst.msk [vmem:[#allocation8] sm:$0xff] %vm105, %v641
    %644 = vst.msk [vmem:[#allocation8 + $0x8] sm:$0xff] %vm105, %v642
    // Predicated region
    $region26: #{tpu_custom_call.1} parent=1 // pred_check
      _
    $region27: #{tpu_custom_call.1} parent=1 // pred_check_branch
      %646 = sbr.rel (0) target = $region29
    $region28: #{tpu_custom_call.1} parent=1 // pred_region
      %648 = vsyncadd [#allocation4], 0
      %s649 = sshll.u32 [#allocation8], 4
      %s650 = int_to_ptr.vmem [resolvable:$true] %s649
      %s651 = sshll.u32 %s3, 4
      %s652 = int_to_ptr.hbm [resolvable:$true] %s651
      %657 = dma.vmem_to_hbm [thread:$0]  %s650, 256, %s652, [#allocation4], 128, 128, 8
    $region29: #{tpu_custom_call.1} parent=1 // pred_fallthru
      _
    // Predicated region
    $region30: #{tpu_custom_call.1} parent=1 // pred_check
      _
    $region31: #{tpu_custom_call.1} parent=1 // pred_check_branch
      %659 = sbr.rel (0) target = $region33
    $region32: #{tpu_custom_call.1} parent=1 // pred_region
      %661 = dma.done [#allocation4], 256
    $region33: #{tpu_custom_call.1} parent=1 // pred_fallthru
      _
    %662 = vsyncpa [#allocation3], 1
    %663 = vsyncpa [#allocation6], 1
    %664 = vsyncpa [#allocation4], 1

</llo_original>
